<compile_context>
chip_gen: v5e
topology: v5e:2x2
jax: 0.10.0
libtpu: 0.0.40
codegen_flags: <defaults>
</compile_context>

<pallas_src>
import functools

import jax
import jax.numpy as jnp
from jax.experimental import pallas as pl
from jax.experimental.pallas import tpu as pltpu

BN_EPS = 1e-5
C_PAD = 128                      # lane-dense channel padding (multiple of 128)
VMEM_LIMIT = 32 * 1024 * 1024    # safe on v5e/v6e/v7x; tiles here are far smaller


def _conv_stats_kernel(p_ref, w_ref, g_ref, b_ref, conv_ref, stats_ref, *, m_total):
    """Pass 1: conv matmul tile + global per-channel sum/sumsq accumulation.

    p_ref:     (TM, K)  bf16 im2col patch tile (streamed)
    w_ref:     (K, Cp)  bf16 weight            (resident)
    g_ref:     (1, Cp)  f32 BN gamma           (resident, zero-padded)
    b_ref:     (1, Cp)  f32 BN beta            (resident, zero-padded)
    conv_ref:  (TM, Cp) f32 conv output tile
    stats_ref: (8, Cp)  f32 resident stats: row0=sum, row1=sumsq,
                        row2=scale (gamma*inv_std), row3=shift (beta-mean*scale)
    """
    i = pl.program_id(0)

    @pl.when(i == 0)
    def _init():
        stats_ref[...] = jnp.zeros_like(stats_ref)

    # Conv as one MXU matmul (bf16 in, f32 accumulation).
    acc = jnp.dot(p_ref[...], w_ref[...], preferred_element_type=jnp.float32)
    conv_ref[...] = acc

    # Running sum / sum-of-squares (global BN statistics over all tiles).
    stats_ref[0:1, :] += jnp.sum(acc, axis=0, keepdims=True)
    stats_ref[1:2, :] += jnp.sum(acc * acc, axis=0, keepdims=True)

    @pl.when(i == pl.num_programs(0) - 1)
    def _finalize():
        inv_m = jnp.float32(1.0 / m_total)
        mean = stats_ref[0:1, :] * inv_m
        var = stats_ref[1:2, :] * inv_m - mean * mean          # biased variance
        inv_std = jax.lax.rsqrt(var + BN_EPS)
        scale = g_ref[...] * inv_std
        shift = b_ref[...] - mean * scale
        stats_ref[2:3, :] = scale
        stats_ref[3:4, :] = shift


def _bn_prelu_kernel(conv_ref, stats_ref, alpha_ref, out_ref):
    """Pass 2: y = conv*scale + shift ; PReLU(y). All tiles are 128-lane dense.

    conv_ref:  (TM, Cp) f32 conv tile
    stats_ref: (8, Cp)  f32 resident stats (rows 2/3 = scale/shift)
    alpha_ref: (1,)     f32 PReLU slope in SMEM
    out_ref:   (TM, Cp) f32
    """
    scale = stats_ref[2:3, :]
    shift = stats_ref[3:4, :]
    alpha = alpha_ref[0]                     # scalar read from SMEM
    y = conv_ref[...] * scale + shift
    out_ref[...] = jnp.where(y >= 0.0, y, alpha * y)


@functools.partial(jax.jit, static_argnames=("tm",))
def cnn_encoder_forward(x_nchw, w_oihw, gamma, beta, alpha, *, tm=512):
    """x_nchw: (N, Cin, H, W); w_oihw: (Cout, Cin, 3, 3); gamma/beta: (Cout,); alpha: scalar."""
    N, Cin, H, W = x_nchw.shape
    Cout = w_oihw.shape[0]
    K = 9 * Cin
    Cp = C_PAD
    M = N * H * W

    # ---- glue: NCHW -> NHWC, zero-pad spatial, bf16 im2col patches ----
    # TODO(synk): replace explicit im2col with in-kernel 9-tap accumulation over
    # halo-loaded NHWC tiles to cut HBM read traffic ~9x (needs overlapping
    # row windows / manual DMA); bf16 patches already halve the DMA bytes.
    x_nhwc = jnp.transpose(x_nchw, (0, 2, 3, 1)).astype(jnp.bfloat16)
    xp = jnp.pad(x_nhwc, ((0, 0), (1, 1), (1, 1), (0, 0)))
    patches = [xp[:, dy:dy + H, dx:dx + W, :] for dy in range(3) for dx in range(3)]
    pat = jnp.concatenate(patches, axis=-1).reshape(M, K)

    n_tiles = pl.cdiv(M, tm)
    Mp = n_tiles * tm
    if Mp != M:
        pat = jnp.pad(pat, ((0, Mp - M), (0, 0)))   # zero rows add 0 to sum/sumsq

    # weight: OIHW -> (kh, kw, Cin, Cout) -> (K, Cout) -> pad Cout to 128, bf16
    w_mat = jnp.transpose(w_oihw, (2, 3, 1, 0)).reshape(K, Cout)
    w_mat = jnp.pad(w_mat, ((0, 0), (0, Cp - Cout))).astype(jnp.bfloat16)

    gamma_p = jnp.pad(gamma.astype(jnp.float32).reshape(1, Cout), ((0, 0), (0, Cp - Cout)))
    beta_p = jnp.pad(beta.astype(jnp.float32).reshape(1, Cout), ((0, 0), (0, Cp - Cout)))
    alpha_s = jnp.asarray(alpha, jnp.float32).reshape(1)

    # ---- pass 1: tiled conv matmul + global sum/sumsq (scale/shift finalized in-kernel) ----
    conv_flat, stats = pl.pallas_call(
        functools.partial(_conv_stats_kernel, m_total=float(M)),
        out_shape=(jax.ShapeDtypeStruct((Mp, Cp), jnp.float32),
                   jax.ShapeDtypeStruct((8, Cp), jnp.float32)),
        grid_spec=pltpu.PrefetchScalarGridSpec(
            num_scalar_prefetch=0,
            grid=(n_tiles,),
            in_specs=[
                pl.BlockSpec((tm, K), lambda i: (i, 0)),   # streamed patch tiles
                pl.BlockSpec((K, Cp), lambda i: (0, 0)),   # resident weight
                pl.BlockSpec((1, Cp), lambda i: (0, 0)),   # resident gamma
                pl.BlockSpec((1, Cp), lambda i: (0, 0)),   # resident beta
            ],
            out_specs=[
                pl.BlockSpec((tm, Cp), lambda i: (i, 0)),  # conv tiles (lane-dense)
                pl.BlockSpec((8, Cp), lambda i: (0, 0)),   # resident stats accumulator
            ],
        ),
        compiler_params=pltpu.CompilerParams(
            dimension_semantics=("arbitrary",),            # stats accumulate across tiles
            vmem_limit_bytes=VMEM_LIMIT),
        cost_estimate=pl.CostEstimate(
            flops=2 * Mp * K * Cp,
            transcendentals=Cp,
            bytes_accessed=Mp * K * 2 + K * Cp * 2 + Mp * Cp * 4 + 10 * Cp * 4),
    )(pat, w_mat, gamma_p, beta_p)

    # ---- pass 2: BN affine + PReLU, lane-dense loads/stores ----
    out_flat = pl.pallas_call(
        _bn_prelu_kernel,
        out_shape=jax.ShapeDtypeStruct((Mp, Cp), jnp.float32),
        grid_spec=pltpu.PrefetchScalarGridSpec(
            num_scalar_prefetch=0,
            grid=(n_tiles,),
            in_specs=[
                pl.BlockSpec((tm, Cp), lambda i: (i, 0)),            # conv tiles
                pl.BlockSpec((8, Cp), lambda i: (0, 0)),             # resident stats
                pl.BlockSpec(memory_space=pltpu.MemorySpace.SMEM),   # alpha scalar
            ],
            out_specs=pl.BlockSpec((tm, Cp), lambda i: (i, 0)),
        ),
        compiler_params=pltpu.CompilerParams(
            dimension_semantics=("parallel",),             # independent tiles (megacore on v7x)
            vmem_limit_bytes=VMEM_LIMIT),
        cost_estimate=pl.CostEstimate(
            flops=4 * Mp * Cp,
            transcendentals=0,
            bytes_accessed=2 * Mp * Cp * 4 + 8 * Cp * 4 + 4),
    )(conv_flat, stats, alpha_s)

    # ---- glue: strip row/channel padding, back to NCHW ----
    out_nhwc = out_flat[:M, :Cout].reshape(N, H, W, Cout)
    return jnp.transpose(out_nhwc, (0, 3, 1, 2))


def _bn_prelu_ref(conv, gamma, beta, alpha):
    mean = conv.mean(axis=(0, 2, 3), keepdims=True)
    var = conv.var(axis=(0, 2, 3), keepdims=True)   # biased variance (training-mode BN)
    y = (conv - mean) / jnp.sqrt(var + BN_EPS)
    y = y * gamma.reshape(1, -1, 1, 1) + beta.reshape(1, -1, 1, 1)
    return jnp.where(y >= 0.0, y, alpha * y)


def _reference_f32(x, w, gamma, beta, alpha):
    """Pure-f32 reference mirroring the PyTorch forward."""
    conv = jax.lax.conv_general_dilated(
        x.astype(jnp.float32), w.astype(jnp.float32),
        window_strides=(1, 1), padding="SAME",
        dimension_numbers=("NCHW", "OIHW", "NCHW"))
    return _bn_prelu_ref(conv, gamma, beta, alpha)


def _reference_bf16_inputs(x, w, gamma, beta, alpha):
    """Reference using the same bf16 matmul inputs / f32 accumulation as the kernel."""
    conv = jax.lax.conv_general_dilated(
        x.astype(jnp.bfloat16), w.astype(jnp.bfloat16),
        window_strides=(1, 1), padding="SAME",
        dimension_numbers=("NCHW", "OIHW", "NCHW"),
        preferred_element_type=jnp.float32)
    return _bn_prelu_ref(conv, gamma, beta, alpha)


if __name__ == "__main__":
    # Small shapes consistent with the module: batch=2, in_c=4, out_c=8, spatial=16.
    N, in_c, out_c, H, W = 2, 4, 8, 16, 16

    key = jax.random.PRNGKey(0)
    kx, kw = jax.random.split(key)
    x = jax.random.normal(kx, (N, in_c, H, W), dtype=jnp.float32)
    w = jax.random.normal(kw, (out_c, in_c, 3, 3), dtype=jnp.float32) * 0.1
    gamma = jnp.ones((out_c,), jnp.float32)   # nn.BatchNorm2d default weight
    beta = jnp.zeros((out_c,), jnp.float32)   # nn.BatchNorm2d default bias
    alpha = jnp.float32(0.25)                 # nn.PReLU default slope

    out = cnn_encoder_forward(x, w, gamma, beta, alpha, tm=128)  # 4-step M grid
    out = jax.block_until_ready(out)
    assert out.shape == (N, out_c, H, W), out.shape

    # Strict check vs a reference with the same bf16 matmul precision.
    ref_bf16 = _reference_bf16_inputs(x, w, gamma, beta, alpha)
    assert jnp.allclose(out, ref_bf16, atol=2e-3, rtol=2e-3), \
        float(jnp.max(jnp.abs(out - ref_bf16)))
    # Looser sanity check vs the pure-f32 PyTorch-equivalent forward.
    ref_f32 = _reference_f32(x, w, gamma, beta, alpha)
    assert jnp.allclose(out, ref_f32, atol=5e-2, rtol=5e-2), \
        float(jnp.max(jnp.abs(out - ref_f32)))

    print("KERNEL_OK")
</pallas_src>

<mosaic_0001>
module attributes {stable_mosaic.version = 11 : i64} {
  func.func @_conv_stats_kernel(%arg0: i32, %arg1: memref<128x36xbf16, #tpu.memory_space<vmem>>, %arg2: memref<36x128xbf16, #tpu.memory_space<vmem>>, %arg3: memref<1x128xf32, #tpu.memory_space<vmem>>, %arg4: memref<1x128xf32, #tpu.memory_space<vmem>>, %arg5: memref<128x128xf32, #tpu.memory_space<vmem>>, %arg6: memref<8x128xf32, #tpu.memory_space<vmem>>) attributes {dimension_semantics = [#tpu.dimension_semantics<arbitrary>], iteration_bounds = array<i64: 4>, scalar_prefetch = 0 : i64, scratch_operands = 0 : i64, tpu.core_type = #tpu.core_type<tc>, window_params = [{transform_indices = @transform_0, window_bounds = array<i64: 128, 36>}, {pipeline_mode = #tpu.pipeline_mode<synchronous>, transform_indices = @transform_1, window_bounds = array<i64: 36, 128>}, {pipeline_mode = #tpu.pipeline_mode<synchronous>, transform_indices = @transform_2, window_bounds = array<i64: 1, 128>}, {pipeline_mode = #tpu.pipeline_mode<synchronous>, transform_indices = @transform_3, window_bounds = array<i64: 1, 128>}, {transform_indices = @transform_4, window_bounds = array<i64: 128, 128>}, {pipeline_mode = #tpu.pipeline_mode<synchronous>, transform_indices = @transform_5, window_bounds = array<i64: 8, 128>}]} {
    %c0_i32 = arith.constant 0 : i32
    %0 = arith.cmpi eq, %arg0, %c0_i32 : i32
    %1 = arith.extui %0 : i1 to i32
    %c0_i32_0 = arith.constant 0 : i32
    %2 = arith.cmpi ne, %1, %c0_i32_0 : i32
    scf.if %2 {
      %cst_16 = arith.constant 0.000000e+00 : f32
      %21 = vector.broadcast %cst_16 : f32 to vector<8x128xf32>
      %c0_17 = arith.constant 0 : index
      %c0_18 = arith.constant 0 : index
      %22 = vector.load %arg6[%c0_17, %c0_18] : memref<8x128xf32, #tpu.memory_space<vmem>>, vector<8x128xf32>
      tpu.vector_store %arg6[%c0_17, %c0_18], %21 {strides = array<i32>} : memref<8x128xf32, #tpu.memory_space<vmem>>, vector<8x128xf32>,
    } else {
    }
    %c0 = arith.constant 0 : index
    %c0_1 = arith.constant 0 : index
    %3 = vector.load %arg1[%c0, %c0_1] : memref<128x36xbf16, #tpu.memory_space<vmem>>, vector<128x36xbf16>
    %c0_2 = arith.constant 0 : index
    %c0_3 = arith.constant 0 : index
    %4 = vector.load %arg2[%c0_2, %c0_3] : memref<36x128xbf16, #tpu.memory_space<vmem>>, vector<36x128xbf16>
    %cst = arith.constant dense<0.000000e+00> : vector<128x128xf32>
    %5 = tpu.matmul %3, %4, %cst {dimension_numbers = #tpu.dot_dimension_numbers<[1], [0], [0], [1], [0, 0, 1, 1], [], []>} : vector<128x36xbf16>, vector<36x128xbf16>, vector<128x128xf32> -> vector<128x128xf32>
    %c0_4 = arith.constant 0 : index
    %c0_5 = arith.constant 0 : index
    %6 = vector.load %arg5[%c0_4, %c0_5] : memref<128x128xf32, #tpu.memory_space<vmem>>, vector<128x128xf32>
    tpu.vector_store %arg5[%c0_4, %c0_5], %5 {strides = array<i32>} : memref<128x128xf32, #tpu.memory_space<vmem>>, vector<128x128xf32>,
    %c0_6 = arith.constant 0 : index
    %c0_7 = arith.constant 0 : index
    %7 = vector.load %arg6[%c0_6, %c0_7] : memref<8x128xf32, #tpu.memory_space<vmem>>, vector<1x128xf32>
    %cst_8 = arith.constant dense<0.000000e+00> : vector<128xf32>
    %8 = vector.multi_reduction <add>, %5, %cst_8 [0] : vector<128x128xf32> to vector<128xf32>
    %9 = vector.shape_cast %8 : vector<128xf32> to vector<1x128xf32>
    %10 = arith.addf %7, %9 : vector<1x128xf32>
    %c0_9 = arith.constant 0 : index
    %c0_10 = arith.constant 0 : index
    %11 = vector.load %arg6[%c0_9, %c0_10] : memref<8x128xf32, #tpu.memory_space<vmem>>, vector<1x128xf32>
    tpu.vector_store %arg6[%c0_9, %c0_10], %10 {strides = array<i32>} : memref<8x128xf32, #tpu.memory_space<vmem>>, vector<1x128xf32>,
    %c1 = arith.constant 1 : index
    %c0_11 = arith.constant 0 : index
    %12 = vector.load %arg6[%c1, %c0_11] : memref<8x128xf32, #tpu.memory_space<vmem>>, vector<1x128xf32>
    %13 = arith.mulf %5, %5 : vector<128x128xf32>
    %cst_12 = arith.constant dense<0.000000e+00> : vector<128xf32>
    %14 = vector.multi_reduction <add>, %13, %cst_12 [0] : vector<128x128xf32> to vector<128xf32>
    %15 = vector.shape_cast %14 : vector<128xf32> to vector<1x128xf32>
    %16 = arith.addf %12, %15 : vector<1x128xf32>
    %c1_13 = arith.constant 1 : index
    %c0_14 = arith.constant 0 : index
    %17 = vector.load %arg6[%c1_13, %c0_14] : memref<8x128xf32, #tpu.memory_space<vmem>>, vector<1x128xf32>
    tpu.vector_store %arg6[%c1_13, %c0_14], %16 {strides = array<i32>} : memref<8x128xf32, #tpu.memory_space<vmem>>, vector<1x128xf32>,
    %c3_i32 = arith.constant 3 : i32
    %18 = arith.cmpi eq, %arg0, %c3_i32 : i32
    %19 = arith.extui %18 : i1 to i32
    %c0_i32_15 = arith.constant 0 : i32
    %20 = arith.cmpi ne, %19, %c0_i32_15 : i32
    scf.if %20 {
      %c0_16 = arith.constant 0 : index
      %c0_17 = arith.constant 0 : index
      %21 = vector.load %arg6[%c0_16, %c0_17] : memref<8x128xf32, #tpu.memory_space<vmem>>, vector<1x128xf32>
      %cst_18 = arith.constant 0.001953125 : f32
      %22 = vector.broadcast %cst_18 : f32 to vector<1x128xf32>
      %23 = arith.mulf %21, %22 : vector<1x128xf32>
      %c1_19 = arith.constant 1 : index
      %c0_20 = arith.constant 0 : index
      %24 = vector.load %arg6[%c1_19, %c0_20] : memref<8x128xf32, #tpu.memory_space<vmem>>, vector<1x128xf32>
      %cst_21 = arith.constant 0.001953125 : f32
      %25 = vector.broadcast %cst_21 : f32 to vector<1x128xf32>
      %26 = arith.mulf %24, %25 : vector<1x128xf32>
      %27 = arith.mulf %23, %23 : vector<1x128xf32>
      %28 = arith.subf %26, %27 : vector<1x128xf32>
      %cst_22 = arith.constant 9.99999974E-6 : f32
      %29 = vector.broadcast %cst_22 : f32 to vector<1x128xf32>
      %30 = arith.addf %28, %29 : vector<1x128xf32>
      %31 = math.rsqrt %30 : vector<1x128xf32>
      %c0_23 = arith.constant 0 : index
      %c0_24 = arith.constant 0 : index
      %32 = vector.load %arg3[%c0_23, %c0_24] : memref<1x128xf32, #tpu.memory_space<vmem>>, vector<1x128xf32>
      %33 = arith.mulf %32, %31 : vector<1x128xf32>
      %c0_25 = arith.constant 0 : index
      %c0_26 = arith.constant 0 : index
      %34 = vector.load %arg4[%c0_25, %c0_26] : memref<1x128xf32, #tpu.memory_space<vmem>>, vector<1x128xf32>
      %35 = arith.mulf %23, %33 : vector<1x128xf32>
      %36 = arith.subf %34, %35 : vector<1x128xf32>
      %c2 = arith.constant 2 : index
      %c0_27 = arith.constant 0 : index
      %37 = vector.load %arg6[%c2, %c0_27] : memref<8x128xf32, #tpu.memory_space<vmem>>, vector<1x128xf32>
      tpu.vector_store %arg6[%c2, %c0_27], %33 {strides = array<i32>} : memref<8x128xf32, #tpu.memory_space<vmem>>, vector<1x128xf32>,
      %c3 = arith.constant 3 : index
      %c0_28 = arith.constant 0 : index
      %38 = vector.load %arg6[%c3, %c0_28] : memref<8x128xf32, #tpu.memory_space<vmem>>, vector<1x128xf32>
      tpu.vector_store %arg6[%c3, %c0_28], %36 {strides = array<i32>} : memref<8x128xf32, #tpu.memory_space<vmem>>, vector<1x128xf32>,
    } else {
    }
    return
  }
  func.func @transform_0(%arg0: i32) -> (i32, i32) {
    %c0_i32 = arith.constant 0 : i32
    %c0_i32_0 = arith.constant 0 : i32
    return %arg0, %c0_i32 : i32, i32
  }
  func.func @transform_1(%arg0: i32) -> (i32, i32) {
    %c0_i32 = arith.constant 0 : i32
    %c0_i32_0 = arith.constant 0 : i32
    %c0_i32_1 = arith.constant 0 : i32
    return %c0_i32, %c0_i32_0 : i32, i32
  }
  func.func @transform_2(%arg0: i32) -> (i32, i32) {
    %c0_i32 = arith.constant 0 : i32
    %c0_i32_0 = arith.constant 0 : i32
    %c0_i32_1 = arith.constant 0 : i32
    return %c0_i32, %c0_i32_0 : i32, i32
  }
  func.func @transform_3(%arg0: i32) -> (i32, i32) {
    %c0_i32 = arith.constant 0 : i32
    %c0_i32_0 = arith.constant 0 : i32
    %c0_i32_1 = arith.constant 0 : i32
    return %c0_i32, %c0_i32_0 : i32, i32
  }
  func.func @transform_4(%arg0: i32) -> (i32, i32) {
    %c0_i32 = arith.constant 0 : i32
    %c0_i32_0 = arith.constant 0 : i32
    return %arg0, %c0_i32 : i32, i32
  }
  func.func @transform_5(%arg0: i32) -> (i32, i32) {
    %c0_i32 = arith.constant 0 : i32
    %c0_i32_0 = arith.constant 0 : i32
    %c0_i32_1 = arith.constant 0 : i32
    return %c0_i32, %c0_i32_0 : i32, i32
  }
}

module attributes {stable_mosaic.version = 11 : i64} {
  func.func @_bn_prelu_kernel(%arg0: i32, %arg1: memref<128x128xf32, #tpu.memory_space<vmem>>, %arg2: memref<8x128xf32, #tpu.memory_space<vmem>>, %arg3: memref<1xf32, #tpu.memory_space<smem>>, %arg4: memref<128x128xf32, #tpu.memory_space<vmem>>) attributes {dimension_semantics = [#tpu.dimension_semantics<parallel>], iteration_bounds = array<i64: 4>, scalar_prefetch = 0 : i64, scratch_operands = 0 : i64, tpu.core_type = #tpu.core_type<tc>, window_params = [{transform_indices = @transform_0, window_bounds = array<i64: 128, 128>}, {pipeline_mode = #tpu.pipeline_mode<synchronous>, transform_indices = @transform_1, window_bounds = array<i64: 8, 128>}, {transform_indices = @transform_2, window_bounds = array<i64: 1>}, {transform_indices = @transform_3, window_bounds = array<i64: 128, 128>}]} {
    %c2 = arith.constant 2 : index
    %c0 = arith.constant 0 : index
    %0 = vector.load %arg2[%c2, %c0] : memref<8x128xf32, #tpu.memory_space<vmem>>, vector<1x128xf32>
    %c3 = arith.constant 3 : index
    %c0_0 = arith.constant 0 : index
    %1 = vector.load %arg2[%c3, %c0_0] : memref<8x128xf32, #tpu.memory_space<vmem>>, vector<1x128xf32>
    %c0_1 = arith.constant 0 : index
    %2 = memref.load %arg3[%c0_1] : memref<1xf32, #tpu.memory_space<smem>>
    %c0_2 = arith.constant 0 : index
    %c0_3 = arith.constant 0 : index
    %3 = vector.load %arg1[%c0_2, %c0_3] : memref<128x128xf32, #tpu.memory_space<vmem>>, vector<128x128xf32>
    %4 = vector.broadcast %0 : vector<1x128xf32> to vector<128x128xf32>
    %5 = arith.mulf %3, %4 : vector<128x128xf32>
    %6 = vector.broadcast %1 : vector<1x128xf32> to vector<128x128xf32>
    %7 = arith.addf %5, %6 : vector<128x128xf32>
    %cst = arith.constant 0.000000e+00 : f32
    %8 = vector.broadcast %cst : f32 to vector<128x128xf32>
    %9 = arith.cmpf oge, %7, %8 : vector<128x128xf32>
    %10 = vector.broadcast %2 : f32 to vector<128x128xf32>
    %11 = arith.mulf %10, %7 : vector<128x128xf32>
    %12 = arith.select %9, %7, %11 : vector<128x128xi1>, vector<128x128xf32>
    %c0_4 = arith.constant 0 : index
    %c0_5 = arith.constant 0 : index
    %13 = vector.load %arg4[%c0_4, %c0_5] : memref<128x128xf32, #tpu.memory_space<vmem>>, vector<128x128xf32>
    tpu.vector_store %arg4[%c0_4, %c0_5], %12 {strides = array<i32>} : memref<128x128xf32, #tpu.memory_space<vmem>>, vector<128x128xf32>,
    return
  }
  func.func @transform_0(%arg0: i32) -> (i32, i32) {
    %c0_i32 = arith.constant 0 : i32
    %c0_i32_0 = arith.constant 0 : i32
    return %arg0, %c0_i32 : i32, i32
  }
  func.func @transform_1(%arg0: i32) -> (i32, i32) {
    %c0_i32 = arith.constant 0 : i32
    %c0_i32_0 = arith.constant 0 : i32
    %c0_i32_1 = arith.constant 0 : i32
    return %c0_i32, %c0_i32_0 : i32, i32
  }
  func.func @transform_2(%arg0: i32) -> i32 {
    %c0_i32 = arith.constant 0 : i32
    %c0_i32_0 = arith.constant 0 : i32
    return %c0_i32 : i32
  }
  func.func @transform_3(%arg0: i32) -> (i32, i32) {
    %c0_i32 = arith.constant 0 : i32
    %c0_i32_0 = arith.constant 0 : i32
    return %arg0, %c0_i32 : i32, i32
  }
}

</mosaic_0001>

<llo_original>
// kernel: cnn_encoder_forward.3
$region0: #{cnn_encoder_forward.3}
  #allocation0 [shape = 'u32[]', space=smem, size = 0x4, offset = 0x4, fixed_abs, tag = 'smem constant byte address 0x4 - core index']
  #allocation1 [shape = 'u32[72,128]{1,0:T(1,128)}', space=vmem, size = 0x9000, scoped, tag = 'internal scratch']
  #allocation2 [shape = 'f32[1]{0:T(128)S(6)}', space=smem, size = 0x200, scoped, tag = 'scoped memory for cnn_encoder_forward.3']
  %s0 = inlined_call_operand.vmem [shape: f32[512,128], index: 0, kind: input, shape index: {}]
  %s1 = inlined_call_operand.vmem [shape: f32[8,128], index: 1, kind: input, shape index: {}]
  %s2 = inlined_call_operand.<no memory space> [shape: f32[1], index: 2, kind: input, shape index: {}]
  %s3 = inlined_call_operand.vmem [shape: f32[512,128], index: 3, kind: output, shape index: {}]
  %s4 = sld [smem:[#allocation0]]
  $region45: #{cnn_encoder_forward.3} parent=0
    _
  %s6 = ssub.s32 1, %s4
  %s7 = scalar_select 0, %s6, %s4
  %8 = sst [smem:[#allocation2]] %s2
  loop: start=0, step=1, limit=6
  $region2: #{cnn_encoder_forward.3} parent=0 // loop_pre_header
    _
  $region3: #{cnn_encoder_forward.3} parent=0 // loop_header
    %s10 = sphi 0, %s14
    %p11 = scmp.ge.s32.totalorder %s10, 6
    %s20 = sphi 0, %s22
    %s23 = sphi 0, %s20
    %s24 = sphi 0, %s23
    %s40 = sphi 0, %s24
    %s44 = sphi 0, %s44
    %s46 = sphi 0, %s44
    %s47 = sphi 0, %s46
    %s61 = sphi 0, %s47
    %s65 = sphi 0, %s65
    %s67 = sphi 0, %s65
    %s68 = sphi 0, %s67
    %s82 = sphi 0, %s68
    %s88 = sphi 0, %s90
    %s91 = sphi 0, %s88
    %s92 = sphi 0, %s91
    %s108 = sphi 0, %s92
  $region4: #{cnn_encoder_forward.3} parent=0 // loop_header_branch
    %13 = sbr.rel (%p11) target = $region8
  $region5: #{cnn_encoder_forward.3} parent=0 // loop_body
    %s15 = ssub.s32 %s10, 1
    %s16 = ssub.s32 %s10, 2
    %s17 = sadd.s32 %s10, 1
    %s18 = ssub.s32 %s10, %s17
    %p19 = scmp.eq.s32.totalorder %s18, 0
    %s21 = sadd.s32 %s20, 1
    %s22 = scalar_select %p19, %s20, %s21
    %p25 = pneg %p19
    %p26 = scmp.eq.s32.totalorder %s10, 3
    %p27 = por %p25, %p26
    %p28 = scmp.ne.s32.totalorder %s20, %s23
    %p29 = scmp.eq.s32.totalorder %s10, 0
    %p30 = por %p28, %p29
    %p31 = scmp.ne.s32.totalorder %s20, %s23
    %p32 = scmp.eq.s32.totalorder %s15, 3
    %p33 = por %p31, %p32
    %p34 = scmp.ne.s32.totalorder %s23, %s24
    %p35 = scmp.eq.s32.totalorder %s15, 0
    %p36 = por %p34, %p35
    %p37 = scmp.ne.s32.totalorder %s23, %s24
    %p38 = scmp.eq.s32.totalorder %s16, 3
    %p39 = por %p37, %p38
    %p41 = scmp.ne.s32.totalorder %s24, %s40
    %p42 = scmp.eq.s32.totalorder %s16, 0
    %p43 = por %p41, %p42
    %s45 = sadd.s32 %s44, 1
    %p48 = scmp.eq.s32.totalorder %s10, 3
    %p49 = scmp.ne.s32.totalorder %s44, %s46
    %p50 = scmp.eq.s32.totalorder %s10, 0
    %p51 = por %p49, %p50
    %p52 = scmp.ne.s32.totalorder %s44, %s46
    %p53 = scmp.eq.s32.totalorder %s15, 3
    %p54 = por %p52, %p53
    %p55 = scmp.ne.s32.totalorder %s46, %s47
    %p56 = scmp.eq.s32.totalorder %s15, 0
    %p57 = por %p55, %p56
    %p58 = scmp.ne.s32.totalorder %s46, %s47
    %p59 = scmp.eq.s32.totalorder %s16, 3
    %p60 = por %p58, %p59
    %p62 = scmp.ne.s32.totalorder %s47, %s61
    %p63 = scmp.eq.s32.totalorder %s16, 0
    %p64 = por %p62, %p63
    %s66 = sadd.s32 %s65, 1
    %p69 = scmp.eq.s32.totalorder %s10, 3
    %p70 = scmp.ne.s32.totalorder %s65, %s67
    %p71 = scmp.eq.s32.totalorder %s10, 0
    %p72 = por %p70, %p71
    %p73 = scmp.ne.s32.totalorder %s65, %s67
    %p74 = scmp.eq.s32.totalorder %s15, 3
    %p75 = por %p73, %p74
    %p76 = scmp.ne.s32.totalorder %s67, %s68
    %p77 = scmp.eq.s32.totalorder %s15, 0
    %p78 = por %p76, %p77
    %p79 = scmp.ne.s32.totalorder %s67, %s68
    %p80 = scmp.eq.s32.totalorder %s16, 3
    %p81 = por %p79, %p80
    %p83 = scmp.ne.s32.totalorder %s68, %s82
    %p84 = scmp.eq.s32.totalorder %s16, 0
    %p85 = por %p83, %p84
    %s86 = ssub.s32 %s10, %s17
    %p87 = scmp.eq.s32.totalorder %s86, 0
    %s89 = sadd.s32 %s88, 1
    %s90 = scalar_select %p87, %s88, %s89
    %p93 = pneg %p87
    %p94 = scmp.eq.s32.totalorder %s10, 3
    %p95 = por %p93, %p94
    %p96 = scmp.ne.s32.totalorder %s88, %s91
    %p97 = scmp.eq.s32.totalorder %s10, 0
    %p98 = por %p96, %p97
    %p99 = scmp.ne.s32.totalorder %s88, %s91
    %p100 = scmp.eq.s32.totalorder %s15, 3
    %p101 = por %p99, %p100
    %p102 = scmp.ne.s32.totalorder %s91, %s92
    %p103 = scmp.eq.s32.totalorder %s15, 0
    %p104 = por %p102, %p103
    %p105 = scmp.ne.s32.totalorder %s91, %s92
    %p106 = scmp.eq.s32.totalorder %s16, 3
    %p107 = por %p105, %p106
    %p109 = scmp.ne.s32.totalorder %s92, %s108
    %p110 = scmp.eq.s32.totalorder %s16, 0
    %p111 = por %p109, %p110
    %p112 = scmp.le.s32.totalorder 1, %s10
    %p113 = scmp.lt.s32.totalorder %s10, 5
    %p114 = pnand %p112, %p113
    %p115 = pneg %p114
    // Predicated region
    $region9: #{cnn_encoder_forward.3} parent=5 // pred_check
      _
    $region10: #{cnn_encoder_forward.3} parent=5 // pred_check_branch
      %117 = sbr.rel (%p114) target = $region12
    $region11: #{cnn_encoder_forward.3} parent=5 // pred_region
      %s118 = ssub.s32 %s10, 1
      // Predicated region
      $region13: #{cnn_encoder_forward.3} parent=11 // pred_check
        %p119 = pneg %p57
      $region14: #{cnn_encoder_forward.3} parent=11 // pred_check_branch
        %121 = sbr.rel (%p119) target = $region16
      $region15: #{cnn_encoder_forward.3} parent=11 // pred_region
        _
      $region16: #{cnn_encoder_forward.3} parent=11 // pred_fallthru
        _
      // Predicated region
      $region17: #{cnn_encoder_forward.3} parent=11 // pred_check
        %p122 = pneg %p78
      $region18: #{cnn_encoder_forward.3} parent=11 // pred_check_branch
        %124 = sbr.rel (%p122) target = $region20
      $region19: #{cnn_encoder_forward.3} parent=11 // pred_region
        _
      $region20: #{cnn_encoder_forward.3} parent=11 // pred_fallthru
        _
    $region12: #{cnn_encoder_forward.3} parent=5 // pred_fallthru
      _
    %p125 = scmp.lt.s32.totalorder %s10, 4
    // Predicated region
    $region21: #{cnn_encoder_forward.3} parent=5 // pred_check
      %p126 = pneg %p125
    $region22: #{cnn_encoder_forward.3} parent=5 // pred_check_branch
      %128 = sbr.rel (%p126) target = $region24
    $region23: #{cnn_encoder_forward.3} parent=5 // pred_region
      // Predicated region
      $region25: #{cnn_encoder_forward.3} parent=23 // pred_check
        %p129 = pneg %p30
      $region26: #{cnn_encoder_forward.3} parent=23 // pred_check_branch
        %131 = sbr.rel (%p129) target = $region28
      $region27: #{cnn_encoder_forward.3} parent=23 // pred_region
        %s132 = smul.u32 16, %s10
        %p133 = scmp.lt.s32.totalorder %s132, 63
        %s134 = scalar_select %p133, %s132, 63
        %s135 = smul.addr %s134, 8
        %s136 = scalar_lea.vmem %s0, %s135
        %s137 = smul.u32 16, %s10
      $region28: #{cnn_encoder_forward.3} parent=23 // pred_fallthru
        _
    $region24: #{cnn_encoder_forward.3} parent=5 // pred_fallthru
      _
    %p138 = scmp.le.s32.totalorder 1, %s10
    %p139 = scmp.lt.s32.totalorder %s10, 5
    %p140 = pnand %p138, %p139
    %p141 = pneg %p140
    // Predicated region
    $region29: #{cnn_encoder_forward.3} parent=5 // pred_check
      _
    $region30: #{cnn_encoder_forward.3} parent=5 // pred_check_branch
      %143 = sbr.rel (%p140) target = $region32
    $region31: #{cnn_encoder_forward.3} parent=5 // pred_region
      %s144 = ssub.s32 %s10, 1
      %s145 = smul.u32 16, %s15
      %p146 = scmp.lt.s32.totalorder %s145, 63
      %s147 = scalar_select %p146, %s145, 63
      %s148 = smul.addr %s147, 8
      %s149 = scalar_lea.vmem %s0, %s148
      %p150 = pneg %p36
      %p151 = pneg %p33
      %p152 = pneg %p57
      %p153 = pneg %p54
      %p154 = pneg %p78
      %p155 = pneg %p75
      %p156 = pneg %p104
      %p157 = pneg %p101
      %s158 = smul.u32 16, %s15
      %p159 = scmp.lt.s32.totalorder %s158, 63
      %s160 = scalar_select %p159, %s158, 63
      %s161 = smul.addr %s160, 8
      %s162 = scalar_lea.vmem %s3, %s161
      %s163 = smul.u32 16, %s15
      %p164 = scmp.lt.s32.totalorder %s163, 63
      %s165 = scalar_select %p164, %s163, 63
      %s166 = smul.addr %s165, 8
      %s167 = scalar_lea.vmem %s0, %s166
      %s168 = smul.u32 16, %s15
      %s169 = smul.u32 16, %s15
      %p170 = scmp.lt.s32.totalorder %s169, 63
      %s171 = scalar_select %p170, %s169, 63
      %s172 = smul.addr %s171, 8
      %s173 = scalar_lea.vmem %s3, %s172
      %s174 = smul.u32 16, %s15
      %v175 = vld [vmem:[%s1 + $0x2] sm:$0x1]
      %v176 = vld [vmem:[%s1 + $0x3] sm:$0x1]
      %s177 = sld [smem:[#allocation2]]
      %v178 = vld [vmem:[%s167] sm:$0xff]
      %v179 = vld [vmem:[%s167 + $0x8] sm:$0xff]
      %v180 = vld [vmem:[%s167 + $0x10] sm:$0xff]
      %v181 = vld [vmem:[%s167 + $0x18] sm:$0xff]
      %v182 = vld [vmem:[%s167 + $0x20] sm:$0xff]
      %v183 = vld [vmem:[%s167 + $0x28] sm:$0xff]
      %v184 = vld [vmem:[%s167 + $0x30] sm:$0xff]
      %v185 = vld [vmem:[%s167 + $0x38] sm:$0xff]
      %v186 = vld [vmem:[%s167 + $0x40] sm:$0xff]
      %v187 = vld [vmem:[%s167 + $0x48] sm:$0xff]
      %v188 = vld [vmem:[%s167 + $0x50] sm:$0xff]
      %v189 = vld [vmem:[%s167 + $0x58] sm:$0xff]
      %v190 = vld [vmem:[%s167 + $0x60] sm:$0xff]
      %v191 = vld [vmem:[%s167 + $0x68] sm:$0xff]
      %v192 = vld [vmem:[%s167 + $0x70] sm:$0xff]
      %v193 = vld [vmem:[%s167 + $0x78] sm:$0xff]
      %v194 = vperm.slane %v175, 0
      %v195 = vmul.f32 %v178, %v194
      %v196 = vmul.f32 %v179, %v194
      %v197 = vmul.f32 %v180, %v194
      %v198 = vmul.f32 %v181, %v194
      %v199 = vmul.f32 %v182, %v194
      %v200 = vmul.f32 %v183, %v194
      %v201 = vmul.f32 %v184, %v194
      %v202 = vmul.f32 %v185, %v194
      %v203 = vmul.f32 %v186, %v194
      %v204 = vmul.f32 %v187, %v194
      %v205 = vmul.f32 %v188, %v194
      %v206 = vmul.f32 %v189, %v194
      %v207 = vmul.f32 %v190, %v194
      %v208 = vmul.f32 %v191, %v194
      %v209 = vmul.f32 %v192, %v194
      %v210 = vmul.f32 %v193, %v194
      %v211 = vperm.slane %v176, 0
      %v212 = vadd.f32 %v195, %v211
      %v213 = vadd.f32 %v196, %v211
      %v214 = vadd.f32 %v197, %v211
      %v215 = vadd.f32 %v198, %v211
      %v216 = vadd.f32 %v199, %v211
      %v217 = vadd.f32 %v200, %v211
      %v218 = vadd.f32 %v201, %v211
      %v219 = vadd.f32 %v202, %v211
      %v220 = vadd.f32 %v203, %v211
      %v221 = vadd.f32 %v204, %v211
      %v222 = vadd.f32 %v205, %v211
      %v223 = vadd.f32 %v206, %v211
      %v224 = vadd.f32 %v207, %v211
      %v225 = vadd.f32 %v208, %v211
      %v226 = vadd.f32 %v209, %v211
      %v227 = vadd.f32 %v210, %v211
      %vm228 = vcmp.ge.f32.partialorder %v212, 0.0
      %vm229 = vcmp.ge.f32.partialorder %v213, 0.0
      %vm230 = vcmp.ge.f32.partialorder %v214, 0.0
      %vm231 = vcmp.ge.f32.partialorder %v215, 0.0
      %vm232 = vcmp.ge.f32.partialorder %v216, 0.0
      %vm233 = vcmp.ge.f32.partialorder %v217, 0.0
      %vm234 = vcmp.ge.f32.partialorder %v218, 0.0
      %vm235 = vcmp.ge.f32.partialorder %v219, 0.0
      %vm236 = vcmp.ge.f32.partialorder %v220, 0.0
      %vm237 = vcmp.ge.f32.partialorder %v221, 0.0
      %vm238 = vcmp.ge.f32.partialorder %v222, 0.0
      %vm239 = vcmp.ge.f32.partialorder %v223, 0.0
      %vm240 = vcmp.ge.f32.partialorder %v224, 0.0
      %vm241 = vcmp.ge.f32.partialorder %v225, 0.0
      %vm242 = vcmp.ge.f32.partialorder %v226, 0.0
      %vm243 = vcmp.ge.f32.partialorder %v227, 0.0
      %v244 = vstv %s177
      %v245 = vmul.f32 %v244, %v212
      %v246 = vmul.f32 %v244, %v213
      %v247 = vmul.f32 %v244, %v214
      %v248 = vmul.f32 %v244, %v215
      %v249 = vmul.f32 %v244, %v216
      %v250 = vmul.f32 %v244, %v217
      %v251 = vmul.f32 %v244, %v218
      %v252 = vmul.f32 %v244, %v219
      %v253 = vmul.f32 %v244, %v220
      %v254 = vmul.f32 %v244, %v221
      %v255 = vmul.f32 %v244, %v222
      %v256 = vmul.f32 %v244, %v223
      %v257 = vmul.f32 %v244, %v224
      %v258 = vmul.f32 %v244, %v225
      %v259 = vmul.f32 %v244, %v226
      %v260 = vmul.f32 %v244, %v227
      %v261 = vsel %vm228, %v212, %v245
      %v262 = vsel %vm229, %v213, %v246
      %v263 = vsel %vm230, %v214, %v247
      %v264 = vsel %vm231, %v215, %v248
      %v265 = vsel %vm232, %v216, %v249
      %v266 = vsel %vm233, %v217, %v250
      %v267 = vsel %vm234, %v218, %v251
      %v268 = vsel %vm235, %v219, %v252
      %v269 = vsel %vm236, %v220, %v253
      %v270 = vsel %vm237, %v221, %v254
      %v271 = vsel %vm238, %v222, %v255
      %v272 = vsel %vm239, %v223, %v256
      %v273 = vsel %vm240, %v224, %v257
      %v274 = vsel %vm241, %v225, %v258
      %v275 = vsel %vm242, %v226, %v259
      %v276 = vsel %vm243, %v227, %v260
      %277 = vst [vmem:[%s173] sm:$0xff] %v261
      %278 = vst [vmem:[%s173 + $0x8] sm:$0xff] %v262
      %279 = vst [vmem:[%s173 + $0x10] sm:$0xff] %v263
      %280 = vst [vmem:[%s173 + $0x18] sm:$0xff] %v264
      %281 = vst [vmem:[%s173 + $0x20] sm:$0xff] %v265
      %282 = vst [vmem:[%s173 + $0x28] sm:$0xff] %v266
      %283 = vst [vmem:[%s173 + $0x30] sm:$0xff] %v267
      %284 = vst [vmem:[%s173 + $0x38] sm:$0xff] %v268
      %285 = vst [vmem:[%s173 + $0x40] sm:$0xff] %v269
      %286 = vst [vmem:[%s173 + $0x48] sm:$0xff] %v270
      %287 = vst [vmem:[%s173 + $0x50] sm:$0xff] %v271
      %288 = vst [vmem:[%s173 + $0x58] sm:$0xff] %v272
      %289 = vst [vmem:[%s173 + $0x60] sm:$0xff] %v273
      %290 = vst [vmem:[%s173 + $0x68] sm:$0xff] %v274
      %291 = vst [vmem:[%s173 + $0x70] sm:$0xff] %v275
      %292 = vst [vmem:[%s173 + $0x78] sm:$0xff] %v276
      %s293 = smul.u32 16, %s15
      %p294 = scmp.lt.s32.totalorder %s293, 63
      %s295 = scalar_select %p294, %s293, 63
      %s296 = smul.addr %s295, 8
      %s297 = scalar_lea.vmem %s3, %s296
      // Predicated region
      $region33: #{cnn_encoder_forward.3} parent=31 // pred_check
        %p298 = pneg %p101
      $region34: #{cnn_encoder_forward.3} parent=31 // pred_check_branch
        %300 = sbr.rel (%p298) target = $region36
      $region35: #{cnn_encoder_forward.3} parent=31 // pred_region
        %s301 = smul.u32 16, %s15
      $region36: #{cnn_encoder_forward.3} parent=31 // pred_fallthru
        _
    $region32: #{cnn_encoder_forward.3} parent=5 // pred_fallthru
      _
    %p302 = scmp.le.s32.totalorder 2, %s10
    // Predicated region
    $region37: #{cnn_encoder_forward.3} parent=5 // pred_check
      %p303 = pneg %p302
    $region38: #{cnn_encoder_forward.3} parent=5 // pred_check_branch
      %305 = sbr.rel (%p303) target = $region40
    $region39: #{cnn_encoder_forward.3} parent=5 // pred_region
      %s306 = ssub.s32 %s10, 2
      // Predicated region
      $region41: #{cnn_encoder_forward.3} parent=39 // pred_check
        %p307 = pneg %p107
      $region42: #{cnn_encoder_forward.3} parent=39 // pred_check_branch
        %309 = sbr.rel (%p307) target = $region44
      $region43: #{cnn_encoder_forward.3} parent=39 // pred_region
        %s310 = smul.u32 16, %s16
        %p311 = scmp.lt.s32.totalorder %s310, 63
        %s312 = scalar_select %p311, %s310, 63
        %s313 = smul.addr %s312, 8
        %s314 = scalar_lea.vmem %s3, %s313
      $region44: #{cnn_encoder_forward.3} parent=39 // pred_fallthru
        _
    $region40: #{cnn_encoder_forward.3} parent=5 // pred_fallthru
      _
  $region6: #{cnn_encoder_forward.3} parent=0 // loop_footer
    %s14 = sadd.s32 1, %s10
  $region7: #{cnn_encoder_forward.3} parent=0 // loop_footer_branch
    %9 = sbr.rel target = $region3
  $region8: #{cnn_encoder_forward.3} parent=0 // loop_exit
    _

// kernel: cnn_encoder_forward.2
$region0: #{cnn_encoder_forward.2}
  #allocation0 [shape = 'u32[]', space=smem, size = 0x4, offset = 0x4, fixed_abs, tag = 'smem constant byte address 0x4 - core index']
  #allocation1 [shape = 'u32[72,128]{1,0:T(1,128)}', space=vmem, size = 0x9000, scoped, tag = 'internal scratch']
  %s0 = inlined_call_operand.vmem [shape: bf16[512,36], index: 0, kind: input, shape index: {}]
  %s1 = inlined_call_operand.vmem [shape: bf16[36,128], index: 1, kind: input, shape index: {}]
  %s2 = inlined_call_operand.vmem [shape: f32[1,128], index: 2, kind: input, shape index: {}]
  %s3 = inlined_call_operand.vmem [shape: f32[1,128], index: 3, kind: input, shape index: {}]
  %s4 = inlined_call_operand.vmem [shape: f32[512,128], index: 4, kind: output, shape index: {0}]
  %s5 = inlined_call_operand.vmem [shape: f32[8,128], index: 5, kind: output, shape index: {1}]
  %6 = xla_tuple %s4, %s5
  %s7 = sld [smem:[#allocation0]]
  $region65: #{cnn_encoder_forward.2} parent=0
    _
  %s9 = ssub.s32 1, %s7
  %s10 = scalar_select 0, %s9, %s7
  loop: start=0, step=1, limit=6
  $region2: #{cnn_encoder_forward.2} parent=0 // loop_pre_header
    _
  $region3: #{cnn_encoder_forward.2} parent=0 // loop_header
    %s12 = sphi 0, %s16
    %p13 = scmp.ge.s32.totalorder %s12, 6
    %s22 = sphi 0, %s24
    %s25 = sphi 0, %s22
    %s26 = sphi 0, %s25
    %s42 = sphi 0, %s26
    %s46 = sphi 0, %s46
    %s48 = sphi 0, %s46
    %s49 = sphi 0, %s48
    %s63 = sphi 0, %s49
    %s67 = sphi 0, %s67
    %s69 = sphi 0, %s67
    %s70 = sphi 0, %s69
    %s84 = sphi 0, %s70
    %s88 = sphi 0, %s88
    %s90 = sphi 0, %s88
    %s91 = sphi 0, %s90
    %s105 = sphi 0, %s91
    %s111 = sphi 0, %s113
    %s114 = sphi 0, %s111
    %s115 = sphi 0, %s114
    %s131 = sphi 0, %s115
    %s135 = sphi 0, %s135
    %s137 = sphi 0, %s135
    %s138 = sphi 0, %s137
    %s152 = sphi 0, %s138
  $region4: #{cnn_encoder_forward.2} parent=0 // loop_header_branch
    %15 = sbr.rel (%p13) target = $region8
  $region5: #{cnn_encoder_forward.2} parent=0 // loop_body
    %s17 = ssub.s32 %s12, 1
    %s18 = ssub.s32 %s12, 2
    %s19 = sadd.s32 %s12, 1
    %s20 = ssub.s32 %s12, %s19
    %p21 = scmp.eq.s32.totalorder %s20, 0
    %s23 = sadd.s32 %s22, 1
    %s24 = scalar_select %p21, %s22, %s23
    %p27 = pneg %p21
    %p28 = scmp.eq.s32.totalorder %s12, 3
    %p29 = por %p27, %p28
    %p30 = scmp.ne.s32.totalorder %s22, %s25
    %p31 = scmp.eq.s32.totalorder %s12, 0
    %p32 = por %p30, %p31
    %p33 = scmp.ne.s32.totalorder %s22, %s25
    %p34 = scmp.eq.s32.totalorder %s17, 3
    %p35 = por %p33, %p34
    %p36 = scmp.ne.s32.totalorder %s25, %s26
    %p37 = scmp.eq.s32.totalorder %s17, 0
    %p38 = por %p36, %p37
    %p39 = scmp.ne.s32.totalorder %s25, %s26
    %p40 = scmp.eq.s32.totalorder %s18, 3
    %p41 = por %p39, %p40
    %p43 = scmp.ne.s32.totalorder %s26, %s42
    %p44 = scmp.eq.s32.totalorder %s18, 0
    %p45 = por %p43, %p44
    %s47 = sadd.s32 %s46, 1
    %p50 = scmp.eq.s32.totalorder %s12, 3
    %p51 = scmp.ne.s32.totalorder %s46, %s48
    %p52 = scmp.eq.s32.totalorder %s12, 0
    %p53 = por %p51, %p52
    %p54 = scmp.ne.s32.totalorder %s46, %s48
    %p55 = scmp.eq.s32.totalorder %s17, 3
    %p56 = por %p54, %p55
    %p57 = scmp.ne.s32.totalorder %s48, %s49
    %p58 = scmp.eq.s32.totalorder %s17, 0
    %p59 = por %p57, %p58
    %p60 = scmp.ne.s32.totalorder %s48, %s49
    %p61 = scmp.eq.s32.totalorder %s18, 3
    %p62 = por %p60, %p61
    %p64 = scmp.ne.s32.totalorder %s49, %s63
    %p65 = scmp.eq.s32.totalorder %s18, 0
    %p66 = por %p64, %p65
    %s68 = sadd.s32 %s67, 1
    %p71 = scmp.eq.s32.totalorder %s12, 3
    %p72 = scmp.ne.s32.totalorder %s67, %s69
    %p73 = scmp.eq.s32.totalorder %s12, 0
    %p74 = por %p72, %p73
    %p75 = scmp.ne.s32.totalorder %s67, %s69
    %p76 = scmp.eq.s32.totalorder %s17, 3
    %p77 = por %p75, %p76
    %p78 = scmp.ne.s32.totalorder %s69, %s70
    %p79 = scmp.eq.s32.totalorder %s17, 0
    %p80 = por %p78, %p79
    %p81 = scmp.ne.s32.totalorder %s69, %s70
    %p82 = scmp.eq.s32.totalorder %s18, 3
    %p83 = por %p81, %p82
    %p85 = scmp.ne.s32.totalorder %s70, %s84
    %p86 = scmp.eq.s32.totalorder %s18, 0
    %p87 = por %p85, %p86
    %s89 = sadd.s32 %s88, 1
    %p92 = scmp.eq.s32.totalorder %s12, 3
    %p93 = scmp.ne.s32.totalorder %s88, %s90
    %p94 = scmp.eq.s32.totalorder %s12, 0
    %p95 = por %p93, %p94
    %p96 = scmp.ne.s32.totalorder %s88, %s90
    %p97 = scmp.eq.s32.totalorder %s17, 3
    %p98 = por %p96, %p97
    %p99 = scmp.ne.s32.totalorder %s90, %s91
    %p100 = scmp.eq.s32.totalorder %s17, 0
    %p101 = por %p99, %p100
    %p102 = scmp.ne.s32.totalorder %s90, %s91
    %p103 = scmp.eq.s32.totalorder %s18, 3
    %p104 = por %p102, %p103
    %p106 = scmp.ne.s32.totalorder %s91, %s105
    %p107 = scmp.eq.s32.totalorder %s18, 0
    %p108 = por %p106, %p107
    %s109 = ssub.s32 %s12, %s19
    %p110 = scmp.eq.s32.totalorder %s109, 0
    %s112 = sadd.s32 %s111, 1
    %s113 = scalar_select %p110, %s111, %s112
    %p116 = pneg %p110
    %p117 = scmp.eq.s32.totalorder %s12, 3
    %p118 = por %p116, %p117
    %p119 = scmp.ne.s32.totalorder %s111, %s114
    %p120 = scmp.eq.s32.totalorder %s12, 0
    %p121 = por %p119, %p120
    %p122 = scmp.ne.s32.totalorder %s111, %s114
    %p123 = scmp.eq.s32.totalorder %s17, 3
    %p124 = por %p122, %p123
    %p125 = scmp.ne.s32.totalorder %s114, %s115
    %p126 = scmp.eq.s32.totalorder %s17, 0
    %p127 = por %p125, %p126
    %p128 = scmp.ne.s32.totalorder %s114, %s115
    %p129 = scmp.eq.s32.totalorder %s18, 3
    %p130 = por %p128, %p129
    %p132 = scmp.ne.s32.totalorder %s115, %s131
    %p133 = scmp.eq.s32.totalorder %s18, 0
    %p134 = por %p132, %p133
    %s136 = sadd.s32 %s135, 1
    %p139 = scmp.eq.s32.totalorder %s12, 3
    %p140 = scmp.ne.s32.totalorder %s135, %s137
    %p141 = scmp.eq.s32.totalorder %s12, 0
    %p142 = por %p140, %p141
    %p143 = scmp.ne.s32.totalorder %s135, %s137
    %p144 = scmp.eq.s32.totalorder %s17, 3
    %p145 = por %p143, %p144
    %p146 = scmp.ne.s32.totalorder %s137, %s138
    %p147 = scmp.eq.s32.totalorder %s17, 0
    %p148 = por %p146, %p147
    %p149 = scmp.ne.s32.totalorder %s137, %s138
    %p150 = scmp.eq.s32.totalorder %s18, 3
    %p151 = por %p149, %p150
    %p153 = scmp.ne.s32.totalorder %s138, %s152
    %p154 = scmp.eq.s32.totalorder %s18, 0
    %p155 = por %p153, %p154
    %p156 = scmp.le.s32.totalorder 1, %s12
    %p157 = scmp.lt.s32.totalorder %s12, 5
    %p158 = pnand %p156, %p157
    %p159 = pneg %p158
    // Predicated region
    $region9: #{cnn_encoder_forward.2} parent=5 // pred_check
      _
    $region10: #{cnn_encoder_forward.2} parent=5 // pred_check_branch
      %161 = sbr.rel (%p158) target = $region12
    $region11: #{cnn_encoder_forward.2} parent=5 // pred_region
      %s162 = ssub.s32 %s12, 1
      // Predicated region
      $region13: #{cnn_encoder_forward.2} parent=11 // pred_check
        %p163 = pneg %p59
      $region14: #{cnn_encoder_forward.2} parent=11 // pred_check_branch
        %165 = sbr.rel (%p163) target = $region16
      $region15: #{cnn_encoder_forward.2} parent=11 // pred_region
        _
      $region16: #{cnn_encoder_forward.2} parent=11 // pred_fallthru
        _
      // Predicated region
      $region17: #{cnn_encoder_forward.2} parent=11 // pred_check
        %p166 = pneg %p80
      $region18: #{cnn_encoder_forward.2} parent=11 // pred_check_branch
        %168 = sbr.rel (%p166) target = $region20
      $region19: #{cnn_encoder_forward.2} parent=11 // pred_region
        _
      $region20: #{cnn_encoder_forward.2} parent=11 // pred_fallthru
        _
      // Predicated region
      $region21: #{cnn_encoder_forward.2} parent=11 // pred_check
        %p169 = pneg %p101
      $region22: #{cnn_encoder_forward.2} parent=11 // pred_check_branch
        %171 = sbr.rel (%p169) target = $region24
      $region23: #{cnn_encoder_forward.2} parent=11 // pred_region
        _
      $region24: #{cnn_encoder_forward.2} parent=11 // pred_fallthru
        _
    $region12: #{cnn_encoder_forward.2} parent=5 // pred_fallthru
      _
    %p172 = scmp.lt.s32.totalorder %s12, 4
    // Predicated region
    $region25: #{cnn_encoder_forward.2} parent=5 // pred_check
      %p173 = pneg %p172
    $region26: #{cnn_encoder_forward.2} parent=5 // pred_check_branch
      %175 = sbr.rel (%p173) target = $region28
    $region27: #{cnn_encoder_forward.2} parent=5 // pred_region
      // Predicated region
      $region29: #{cnn_encoder_forward.2} parent=27 // pred_check
        %p176 = pneg %p32
      $region30: #{cnn_encoder_forward.2} parent=27 // pred_check_branch
        %178 = sbr.rel (%p176) target = $region32
      $region31: #{cnn_encoder_forward.2} parent=27 // pred_region
        %s179 = smul.u32 16, %s12
        %p180 = scmp.lt.s32.totalorder %s179, 63
        %s181 = scalar_select %p180, %s179, 63
        %s182 = smul.addr %s181, 4
        %s183 = scalar_lea.vmem %s0, %s182
        %s184 = smul.u32 16, %s12
      $region32: #{cnn_encoder_forward.2} parent=27 // pred_fallthru
        _
    $region28: #{cnn_encoder_forward.2} parent=5 // pred_fallthru
      _
    %p185 = scmp.le.s32.totalorder 1, %s12
    %p186 = scmp.lt.s32.totalorder %s12, 5
    %p187 = pnand %p185, %p186
    %p188 = pneg %p187
    // Predicated region
    $region33: #{cnn_encoder_forward.2} parent=5 // pred_check
      _
    $region34: #{cnn_encoder_forward.2} parent=5 // pred_check_branch
      %190 = sbr.rel (%p187) target = $region36
    $region35: #{cnn_encoder_forward.2} parent=5 // pred_region
      %s191 = ssub.s32 %s12, 1
      %s192 = smul.u32 16, %s17
      %p193 = scmp.lt.s32.totalorder %s192, 63
      %s194 = scalar_select %p193, %s192, 63
      %s195 = smul.addr %s194, 4
      %s196 = scalar_lea.vmem %s0, %s195
      %p197 = pneg %p38
      %p198 = pneg %p35
      %p199 = pneg %p59
      %p200 = pneg %p56
      %p201 = pneg %p80
      %p202 = pneg %p77
      %p203 = pneg %p101
      %p204 = pneg %p98
      %p205 = pneg %p127
      %p206 = pneg %p124
      %s207 = smul.u32 16, %s17
      %p208 = scmp.lt.s32.totalorder %s207, 63
      %s209 = scalar_select %p208, %s207, 63
      %s210 = smul.addr %s209, 8
      %s211 = scalar_lea.vmem %s4, %s210
      %p212 = pneg %p148
      %p213 = pneg %p145
      %s214 = smul.u32 16, %s17
      %p215 = scmp.lt.s32.totalorder %s214, 63
      %s216 = scalar_select %p215, %s214, 63
      %s217 = smul.addr %s216, 4
      %s218 = scalar_lea.vmem %s0, %s217
      %s219 = smul.u32 16, %s17
      %s220 = smul.u32 16, %s17
      %p221 = scmp.lt.s32.totalorder %s220, 63
      %s222 = scalar_select %p221, %s220, 63
      %s223 = smul.addr %s222, 8
      %s224 = scalar_lea.vmem %s4, %s223
      %s225 = smul.u32 16, %s17
      %p227 = scmp.eq.s32.totalorder %s17, 0
      // Predicated region
      $region37: #{cnn_encoder_forward.2} parent=35 // pred_check
        %p228 = pneg %p227
      $region38: #{cnn_encoder_forward.2} parent=35 // pred_check_branch
        %230 = sbr.rel (%p228) target = $region40
      $region39: #{cnn_encoder_forward.2} parent=35 // pred_region
        %231 = vst [vmem:[%s5] sm:$0xff] 0.0
      $region40: #{cnn_encoder_forward.2} parent=35 // pred_fallthru
        _
      %v232 = vld [vmem:[%s218] sm:$0xf]
      %v233 = vld [vmem:[%s218 + $0x4] sm:$0xf]
      %v234 = vld [vmem:[%s218 + $0x8] sm:$0xf]
      %v235 = vld [vmem:[%s218 + $0xc] sm:$0xf]
      %v236 = vld [vmem:[%s218 + $0x10] sm:$0xf]
      %v237 = vld [vmem:[%s218 + $0x14] sm:$0xf]
      %v238 = vld [vmem:[%s218 + $0x18] sm:$0xf]
      %v239 = vld [vmem:[%s218 + $0x1c] sm:$0xf]
      %v240 = vld [vmem:[%s218 + $0x20] sm:$0xf]
      %v241 = vld [vmem:[%s218 + $0x24] sm:$0xf]
      %v242 = vld [vmem:[%s218 + $0x28] sm:$0xf]
      %v243 = vld [vmem:[%s218 + $0x2c] sm:$0xf]
      %v244 = vld [vmem:[%s218 + $0x30] sm:$0xf]
      %v245 = vld [vmem:[%s218 + $0x34] sm:$0xf]
      %v246 = vld [vmem:[%s218 + $0x38] sm:$0xf]
      %v247 = vld [vmem:[%s218 + $0x3c] sm:$0xf]
      %v248 = vld [vmem:[%s1] sm:$0xf]
      %v249 = vld [vmem:[%s1 + $0x4] sm:$0xf]
      %v250 = vld [vmem:[%s1 + $0x8] sm:$0xf]
      %v251 = vld [vmem:[%s1 + $0xc] sm:$0xf]
      %v252 = vld [vmem:[%s1 + $0x10] sm:$0x3]
      %v269 = vunpack.c.l.b16 %v232
      %v270 = vunpack.c.l.b16 %v233
      %v271 = vunpack.c.l.b16 %v234
      %v272 = vunpack.c.l.b16 %v235
      %v273 = vunpack.c.l.b16 %v236
      %v274 = vunpack.c.l.b16 %v237
      %v275 = vunpack.c.l.b16 %v238
      %v276 = vunpack.c.l.b16 %v239
      %v277 = vunpack.c.l.b16 %v240
      %v278 = vunpack.c.l.b16 %v241
      %v279 = vunpack.c.l.b16 %v242
      %v280 = vunpack.c.l.b16 %v243
      %v281 = vunpack.c.l.b16 %v244
      %v282 = vunpack.c.l.b16 %v245
      %v283 = vunpack.c.l.b16 %v246
      %v284 = vunpack.c.l.b16 %v247
      %v285 = vpack.c.b16 %v270, %v269
      %v286 = vpack.c.b16 %v272, %v271
      %v287 = vpack.c.b16 %v274, %v273
      %v288 = vpack.c.b16 %v276, %v275
      %v289 = vpack.c.b16 %v278, %v277
      %v290 = vpack.c.b16 %v280, %v279
      %v291 = vpack.c.b16 %v282, %v281
      %v292 = vpack.c.b16 %v284, %v283
      %v298 = vunpack.c.l.b16 %v248
      %v299 = vunpack.c.l.b16 %v249
      %v300 = vunpack.c.l.b16 %v250
      %v301 = vunpack.c.l.b16 %v251
      %v302 = vunpack.c.l.b16 %v252
      %v303 = vpack.c.b16 %v299, %v298
      %v304 = vpack.c.b16 %v301, %v300
      %v305 = vpack.c.b16 %v302, %v302
      %vm308 = vcmask 293888
      %v310 = vsel %vm308, %v285, 0
      %v313 = vsel %vm308, %v286, 0
      %v316 = vsel %vm308, %v287, 0
      %v319 = vsel %vm308, %v288, 0
      %v322 = vsel %vm308, %v289, 0
      %v325 = vsel %vm308, %v290, 0
      %v328 = vsel %vm308, %v291, 0
      %v331 = vsel %vm308, %v292, 0
      %vm333 = vcmask 1041408
      %v335 = vsel %vm333, %v305, 0
      %337 = vmatpush.bf16.msra.mxu0 0
      %338 = vmatpush.bf16.msra.mxu0 0
      %339 = vmatpush.bf16.msra.mxu0 0
      %340 = vmatpush.bf16.msra.mxu0 0
      %341 = vmatpush.bf16.msra.mxu0 0
      %342 = vmatpush.bf16.msra.mxu0 %v335
      %343 = vmatpush.bf16.msra.mxu0 %v304
      %344 = vmatpush.bf16.msra.mxu0 %v303
      %345 = vmatmul.bf16.gmra.mxu0 %v310
      %v346 = vpop.f32.mrf.mxu0
      %v347 = vadd.f32 0.0, %v346
      %v348 = vpop.f32.mrf.mxu0
      %v349 = vadd.f32 0.0, %v348
      %350 = vmatmul.bf16.gmra.mxu0 %v313
      %v351 = vpop.f32.mrf.mxu0
      %v352 = vadd.f32 0.0, %v351
      %v353 = vpop.f32.mrf.mxu0
      %v354 = vadd.f32 0.0, %v353
      %355 = vmatmul.bf16.gmra.mxu0 %v316
      %v356 = vpop.f32.mrf.mxu0
      %v357 = vadd.f32 0.0, %v356
      %v358 = vpop.f32.mrf.mxu0
      %v359 = vadd.f32 0.0, %v358
      %360 = vmatmul.bf16.gmra.mxu0 %v319
      %v361 = vpop.f32.mrf.mxu0
      %v362 = vadd.f32 0.0, %v361
      %v363 = vpop.f32.mrf.mxu0
      %v364 = vadd.f32 0.0, %v363
      %365 = vmatmul.bf16.gmra.mxu0 %v322
      %v366 = vpop.f32.mrf.mxu0
      %v367 = vadd.f32 0.0, %v366
      %v368 = vpop.f32.mrf.mxu0
      %v369 = vadd.f32 0.0, %v368
      %370 = vmatmul.bf16.gmra.mxu0 %v325
      %v371 = vpop.f32.mrf.mxu0
      %v372 = vadd.f32 0.0, %v371
      %v373 = vpop.f32.mrf.mxu0
      %v374 = vadd.f32 0.0, %v373
      %375 = vmatmul.bf16.gmra.mxu0 %v328
      %v376 = vpop.f32.mrf.mxu0
      %v377 = vadd.f32 0.0, %v376
      %v378 = vpop.f32.mrf.mxu0
      %v379 = vadd.f32 0.0, %v378
      %380 = vmatmul.bf16.gmra.mxu0 %v331
      %v381 = vpop.f32.mrf.mxu0
      %v382 = vadd.f32 0.0, %v381
      %v383 = vpop.f32.mrf.mxu0
      %v384 = vadd.f32 0.0, %v383
      %385 = vdwg.mxu0
      %386 = vst [vmem:[%s224] sm:$0xff] %v347
      %387 = vst [vmem:[%s224 + $0x8] sm:$0xff] %v349
      %388 = vst [vmem:[%s224 + $0x10] sm:$0xff] %v352
      %389 = vst [vmem:[%s224 + $0x18] sm:$0xff] %v354
      %390 = vst [vmem:[%s224 + $0x20] sm:$0xff] %v357
      %391 = vst [vmem:[%s224 + $0x28] sm:$0xff] %v359
      %392 = vst [vmem:[%s224 + $0x30] sm:$0xff] %v362
      %393 = vst [vmem:[%s224 + $0x38] sm:$0xff] %v364
      %394 = vst [vmem:[%s224 + $0x40] sm:$0xff] %v367
      %395 = vst [vmem:[%s224 + $0x48] sm:$0xff] %v369
      %396 = vst [vmem:[%s224 + $0x50] sm:$0xff] %v372
      %397 = vst [vmem:[%s224 + $0x58] sm:$0xff] %v374
      %398 = vst [vmem:[%s224 + $0x60] sm:$0xff] %v377
      %399 = vst [vmem:[%s224 + $0x68] sm:$0xff] %v379
      %400 = vst [vmem:[%s224 + $0x70] sm:$0xff] %v382
      %401 = vst [vmem:[%s224 + $0x78] sm:$0xff] %v384
      %v402 = vld [vmem:[%s5] sm:$0x1]
      %v403 = vadd.f32 %v347, %v349
      %v404 = vadd.f32 %v403, %v352
      %v405 = vadd.f32 %v404, %v354
      %v406 = vadd.f32 %v405, %v357
      %v407 = vadd.f32 %v406, %v359
      %v408 = vadd.f32 %v407, %v362
      %v409 = vadd.f32 %v408, %v364
      %v410 = vadd.f32 %v409, %v367
      %v411 = vadd.f32 %v410, %v369
      %v412 = vadd.f32 %v411, %v372
      %v413 = vadd.f32 %v412, %v374
      %v414 = vadd.f32 %v413, %v377
      %v415 = vadd.f32 %v414, %v379
      %v416 = vadd.f32 %v415, %v382
      %v417 = vadd.f32 %v416, %v384
      %v418 = vrot.slane %v417, 4
      %v419 = vadd.f32 %v417, %v418
      %v420 = vrot.slane %v419, 2
      %v421 = vadd.f32 %v419, %v420
      %v422 = vrot.slane %v421, 1
      %v423 = vadd.f32 %v421, %v422
      %v424 = vadd.f32 %v402, %v423
      %425 = vst [vmem:[%s5] sm:$0x1] %v424
      %v426 = vld [vmem:[%s5 + $0x1] sm:$0x1]
      %v427 = vmul.f32 %v347, %v347
      %v428 = vmul.f32 %v349, %v349
      %v429 = vmul.f32 %v352, %v352
      %v430 = vmul.f32 %v354, %v354
      %v431 = vmul.f32 %v357, %v357
      %v432 = vmul.f32 %v359, %v359
      %v433 = vmul.f32 %v362, %v362
      %v434 = vmul.f32 %v364, %v364
      %v435 = vmul.f32 %v367, %v367
      %v436 = vmul.f32 %v369, %v369
      %v437 = vmul.f32 %v372, %v372
      %v438 = vmul.f32 %v374, %v374
      %v439 = vmul.f32 %v377, %v377
      %v440 = vmul.f32 %v379, %v379
      %v441 = vmul.f32 %v382, %v382
      %v442 = vmul.f32 %v384, %v384
      %v443 = vadd.f32 %v427, %v428
      %v444 = vadd.f32 %v443, %v429
      %v445 = vadd.f32 %v444, %v430
      %v446 = vadd.f32 %v445, %v431
      %v447 = vadd.f32 %v446, %v432
      %v448 = vadd.f32 %v447, %v433
      %v449 = vadd.f32 %v448, %v434
      %v450 = vadd.f32 %v449, %v435
      %v451 = vadd.f32 %v450, %v436
      %v452 = vadd.f32 %v451, %v437
      %v453 = vadd.f32 %v452, %v438
      %v454 = vadd.f32 %v453, %v439
      %v455 = vadd.f32 %v454, %v440
      %v456 = vadd.f32 %v455, %v441
      %v457 = vadd.f32 %v456, %v442
      %v458 = vrot.slane %v457, 4
      %v459 = vadd.f32 %v457, %v458
      %v460 = vrot.slane %v459, 2
      %v461 = vadd.f32 %v459, %v460
      %v462 = vrot.slane %v461, 1
      %v463 = vadd.f32 %v461, %v462
      %v464 = vadd.f32 %v426, %v463
      %465 = vst [vmem:[%s5 + $0x1] sm:$0x1] %v464
      %p466 = scmp.eq.s32.totalorder %s17, 3
      // Predicated region
      $region41: #{cnn_encoder_forward.2} parent=35 // pred_check
        %p467 = pneg %p466
      $region42: #{cnn_encoder_forward.2} parent=35 // pred_check_branch
        %469 = sbr.rel (%p467) target = $region44
      $region43: #{cnn_encoder_forward.2} parent=35 // pred_region
        %v470 = vld [vmem:[%s5] sm:$0x1]
        %v471 = vmul.f32 %v470, 0.001953125
        %v472 = vld [vmem:[%s5 + $0x1] sm:$0x1]
        %v473 = vmul.f32 %v472, 0.001953125
        %v474 = vmul.f32 %v471, %v471
        %v475 = vsub.f32 %v473, %v474
        %v476 = vadd.f32 %v475, 1e-05
        %v477 = vrsqrt.pop %v476
        %v478 = vmul.f32 %v477, %v476
        %v479 = vmul.f32 %v478, %v477
        %v480 = vmul.f32 0.5, %v479
        %v481 = vsub.f32 1.5, %v480
        %v482 = vmul.f32 %v477, %v481
        %vm483 = vweird.f32 %v476
        %vm484 = vweird.f32 %v477
        %vm485 = vmor %vm483, %vm484
        %v486 = vsel %vm485, %v477, %v482
        %v487 = vld [vmem:[%s2] sm:$0x1]
        %v488 = vmul.f32 %v487, %v486
        %v489 = vld [vmem:[%s3] sm:$0x1]
        %v490 = vmul.f32 %v471, %v488
        %v491 = vsub.f32 %v489, %v490
        %492 = vst [vmem:[%s5 + $0x2] sm:$0x1] %v488
        %493 = vst [vmem:[%s5 + $0x3] sm:$0x1] %v491
      $region44: #{cnn_encoder_forward.2} parent=35 // pred_fallthru
        _
      %s494 = smul.u32 16, %s17
      %p495 = scmp.lt.s32.totalorder %s494, 63
      %s496 = scalar_select %p495, %s494, 63
      %s497 = smul.addr %s496, 8
      %s498 = scalar_lea.vmem %s4, %s497
      // Predicated region
      $region45: #{cnn_encoder_forward.2} parent=35 // pred_check
        %p499 = pneg %p124
      $region46: #{cnn_encoder_forward.2} parent=35 // pred_check_branch
        %501 = sbr.rel (%p499) target = $region48
      $region47: #{cnn_encoder_forward.2} parent=35 // pred_region
        %s502 = smul.u32 16, %s17
      $region48: #{cnn_encoder_forward.2} parent=35 // pred_fallthru
        _
      // Predicated region
      $region49: #{cnn_encoder_forward.2} parent=35 // pred_check
        %p503 = pneg %p145
      $region50: #{cnn_encoder_forward.2} parent=35 // pred_check_branch
        %505 = sbr.rel (%p503) target = $region52
      $region51: #{cnn_encoder_forward.2} parent=35 // pred_region
        _
      $region52: #{cnn_encoder_forward.2} parent=35 // pred_fallthru
        _
      // Predicated region
      $region53: #{cnn_encoder_forward.2} parent=35 // pred_check
        %p506 = pneg %p145
      $region54: #{cnn_encoder_forward.2} parent=35 // pred_check_branch
        %508 = sbr.rel (%p506) target = $region56
      $region55: #{cnn_encoder_forward.2} parent=35 // pred_region
        _
      $region56: #{cnn_encoder_forward.2} parent=35 // pred_fallthru
        _
    $region36: #{cnn_encoder_forward.2} parent=5 // pred_fallthru
      _
    %p509 = scmp.le.s32.totalorder 2, %s12
    // Predicated region
    $region57: #{cnn_encoder_forward.2} parent=5 // pred_check
      %p510 = pneg %p509
    $region58: #{cnn_encoder_forward.2} parent=5 // pred_check_branch
      %512 = sbr.rel (%p510) target = $region60
    $region59: #{cnn_encoder_forward.2} parent=5 // pred_region
      %s513 = ssub.s32 %s12, 2
      // Predicated region
      $region61: #{cnn_encoder_forward.2} parent=59 // pred_check
        %p514 = pneg %p130
      $region62: #{cnn_encoder_forward.2} parent=59 // pred_check_branch
        %516 = sbr.rel (%p514) target = $region64
      $region63: #{cnn_encoder_forward.2} parent=59 // pred_region
        %s517 = smul.u32 16, %s18
        %p518 = scmp.lt.s32.totalorder %s517, 63
        %s519 = scalar_select %p518, %s517, 63
        %s520 = smul.addr %s519, 8
        %s521 = scalar_lea.vmem %s4, %s520
      $region64: #{cnn_encoder_forward.2} parent=59 // pred_fallthru
        _
    $region60: #{cnn_encoder_forward.2} parent=5 // pred_fallthru
      _
  $region6: #{cnn_encoder_forward.2} parent=0 // loop_footer
    %s16 = sadd.s32 1, %s12
  $region7: #{cnn_encoder_forward.2} parent=0 // loop_footer_branch
    %11 = sbr.rel target = $region3
  $region8: #{cnn_encoder_forward.2} parent=0 // loop_exit
    _

</llo_original>
